<compile_context>
chip_gen: v7x
topology: tpu7x:2x2x1
jax: 0.10.0
libtpu: 0.0.40
codegen_flags: <defaults>
</compile_context>

<pallas_src>
import math

import jax
import jax.numpy as jnp
from jax.experimental import pallas as pl
from jax.experimental.pallas import tpu as pltpu

_SIGMA = 0.05


def _cdiv(a, b):
    return -(-a // b)


def _ga_loss_kernel(i_scaled_ref, i_mask_ref, o_scaled_ref, o_mask_ref,
                    att_ref, out_ref):
    i_s = i_scaled_ref[...]                    # (tb, 1, I)       f32
    o_s = o_scaled_ref[...]                    # (tb, o_tile, 1)  f32
    d = i_s - o_s                              # (tb, o_tile, I)  broadcast
    # Gaussian constant 1/(2*sigma^2) is pre-folded into i_s / o_s.
    ga = 1.0 - jnp.exp(-(d * d))

    m = i_mask_ref[...] * o_mask_ref[...]      # {0,1} f32, broadcast
    att = att_ref[...].astype(jnp.float32)

    # NOTE: keep the true select.  Tail blocks (O / batch remainders) read
    # unspecified VMEM in `att`; the masks come from explicitly padded arrays
    # so the select reliably zeroes those cells.
    out_ref[0, 0] = jnp.sum(jnp.where(m > 0.0, ga * att, 0.0))


def guided_attention_loss(att_ws, ilens, olens, sigma=_SIGMA):
    B, O, I = att_ws.shape
    ilens = ilens.astype(jnp.int32)
    olens = olens.astype(jnp.int32)

    # Exact denominator (count of selected cells).  int32 is exact for any
    # attention tensor that can actually fit on-device.
    denom = jnp.sum(ilens * olens).astype(jnp.float32)

    # ---- tile selection ----------------------------------------------------
    eb = jnp.dtype(att_ws.dtype).itemsize
    sub_mult = 8 * max(1, 4 // eb)             # sublane multiple: 8 f32, 16 bf16
    lane_i = _cdiv(I, 128) * 128
    side_o = 2 * 128 * 4                       # lane-padded o_scaled+o_mask / (b,o)
    side_i = 2 * 8 * lane_i * 4                # i_scaled+i_mask VMEM per batch row
    target_bytes = 8 * 1024 * 1024             # ~8 MiB att tile per grid step
    row_bytes = I * eb + side_o
    slab_bytes = O * row_bytes + side_i        # one full batch element
    if slab_bytes <= target_bytes:
        o_tile = O
        tb = max(1, min(B, target_bytes // max(slab_bytes, 1)))
    else:
        cand = max(sub_mult, (target_bytes // row_bytes) // sub_mult * sub_mult)
        o_tile = min(O, cand)
        tb = 1
    g_o = _cdiv(O, o_tile)
    g_b = _cdiv(B, tb)
    b_pad = g_b * tb
    o_pad = g_o * o_tile

    # ---- precompute per-batch 1-D scaled indices and masks -----------------
    pad_b = b_pad - B
    if pad_b:
        ilens_inv = jnp.pad(ilens, (0, pad_b), constant_values=1)
        olens_inv = jnp.pad(olens, (0, pad_b), constant_values=1)
        ilens_msk = jnp.pad(ilens, (0, pad_b), constant_values=0)
        olens_msk = jnp.pad(olens, (0, pad_b), constant_values=0)
    else:
        ilens_inv = ilens_msk = ilens
        olens_inv = olens_msk = olens

    c = 1.0 / (math.sqrt(2.0) * sigma)         # fold 1/(2*sigma^2) into the ratios
    i_idx = jnp.arange(I, dtype=jnp.float32)
    o_idx = jnp.arange(o_pad, dtype=jnp.float32)
    inv_il = c / ilens_inv.astype(jnp.float32)
    inv_ol = c / olens_inv.astype(jnp.float32)

    i_scaled = (i_idx[None, :] * inv_il[:, None]).reshape(b_pad, 1, I)
    o_scaled = (o_idx[None, :] * inv_ol[:, None]).reshape(b_pad, o_pad, 1)
    i_mask = (jnp.arange(I, dtype=jnp.int32)[None, :] < ilens_msk[:, None]
              ).astype(jnp.float32).reshape(b_pad, 1, I)
    o_mask = (jnp.arange(o_pad, dtype=jnp.int32)[None, :] < olens_msk[:, None]
              ).astype(jnp.float32).reshape(b_pad, o_pad, 1)

    partials = pl.pallas_call(
        _ga_loss_kernel,
        out_shape=jax.ShapeDtypeStruct((g_b, g_o), jnp.float32),
        grid_spec=pltpu.PrefetchScalarGridSpec(
            num_scalar_prefetch=0,
            grid=(g_b, g_o),
            in_specs=[
                pl.BlockSpec((tb, 1, I), lambda g, t: (g, 0, 0)),
                pl.BlockSpec((tb, 1, I), lambda g, t: (g, 0, 0)),
                pl.BlockSpec((tb, o_tile, 1), lambda g, t: (g, t, 0)),
                pl.BlockSpec((tb, o_tile, 1), lambda g, t: (g, t, 0)),
                pl.BlockSpec((tb, o_tile, I), lambda g, t: (g, t, 0)),
            ],
            out_specs=pl.BlockSpec((1, 1), lambda g, t: (g, t),
                                   memory_space=pltpu.SMEM),
        ),
        compiler_params=pltpu.CompilerParams(
            dimension_semantics=("parallel", "parallel"),
            vmem_limit_bytes=48 * 1024 * 1024),
    )(i_scaled, i_mask, o_scaled, o_mask, att_ws)

    return jnp.sum(partials) / denom


def _reference_loss(att_ws, ilens, olens, sigma=_SIGMA):
    """Pure-JAX reference mirroring the PyTorch semantics."""
    B, O, I = att_ws.shape
    o_idx = jnp.arange(O, dtype=jnp.float32)[None, :, None]   # (1, O, 1)
    i_idx = jnp.arange(I, dtype=jnp.float32)[None, None, :]   # (1, 1, I)
    il = ilens.astype(jnp.float32)[:, None, None]
    ol = olens.astype(jnp.float32)[:, None, None]
    seq_mask = (o_idx < ol) & (i_idx < il)
    ga = 1.0 - jnp.exp(-((i_idx / il - o_idx / ol) ** 2) / (2.0 * sigma ** 2))
    losses = jnp.where(seq_mask, ga * att_ws, 0.0)
    return jnp.sum(losses) / jnp.sum(seq_mask.astype(jnp.float32))


if __name__ == "__main__":
    key = jax.random.PRNGKey(0)
    B, max_olen, max_ilen = 2, 16, 16
    att_ws = jax.random.uniform(key, (B, max_olen, max_ilen),
                                dtype=jnp.float32)
    # lengths consistent with max_olen / max_ilen (max of each equals the dim)
    ilens = jnp.array([16, 11], dtype=jnp.int32)
    olens = jnp.array([13, 16], dtype=jnp.int32)

    loss = jax.block_until_ready(guided_attention_loss(att_ws, ilens, olens))
    ref = jax.block_until_ready(_reference_loss(att_ws, ilens, olens))

    assert jnp.allclose(loss, ref, rtol=1e-4, atol=1e-6), (loss, ref)
    print("KERNEL_OK")
</pallas_src>

<mosaic_0001>
module attributes {stable_mosaic.version = 11 : i64} {
  func.func @_ga_loss_kernel(%arg0: i32, %arg1: i32, %arg2: memref<2x1x16xf32, #tpu.memory_space<vmem>>, %arg3: memref<2x1x16xf32, #tpu.memory_space<vmem>>, %arg4: memref<2x16x1xf32, #tpu.memory_space<vmem>>, %arg5: memref<2x16x1xf32, #tpu.memory_space<vmem>>, %arg6: memref<2x16x16xf32, #tpu.memory_space<vmem>>, %arg7: memref<1x1xf32, #tpu.memory_space<smem>>) attributes {dimension_semantics = [#tpu.dimension_semantics<parallel>, #tpu.dimension_semantics<parallel>], iteration_bounds = array<i64: 1, 1>, scalar_prefetch = 0 : i64, scratch_operands = 0 : i64, tpu.core_type = #tpu.core_type<tc>, window_params = [{transform_indices = @transform_0, window_bounds = array<i64: 2, 1, 16>}, {transform_indices = @transform_1, window_bounds = array<i64: 2, 1, 16>}, {transform_indices = @transform_2, window_bounds = array<i64: 2, 16, 1>}, {transform_indices = @transform_3, window_bounds = array<i64: 2, 16, 1>}, {transform_indices = @transform_4, window_bounds = array<i64: 2, 16, 16>}, {transform_indices = @transform_5, window_bounds = array<i64: 1, 1>}]} {
    %c0 = arith.constant 0 : index
    %c0_0 = arith.constant 0 : index
    %c0_1 = arith.constant 0 : index
    %0 = vector.load %arg2[%c0, %c0_0, %c0_1] : memref<2x1x16xf32, #tpu.memory_space<vmem>>, vector<2x1x16xf32>
    %c0_2 = arith.constant 0 : index
    %c0_3 = arith.constant 0 : index
    %c0_4 = arith.constant 0 : index
    %1 = vector.load %arg4[%c0_2, %c0_3, %c0_4] : memref<2x16x1xf32, #tpu.memory_space<vmem>>, vector<2x16x1xf32>
    %2 = vector.broadcast %0 : vector<2x1x16xf32> to vector<2x16x16xf32>
    %3 = vector.broadcast %1 : vector<2x16x1xf32> to vector<2x16x16xf32>
    %4 = arith.subf %2, %3 : vector<2x16x16xf32>
    %5 = arith.mulf %4, %4 : vector<2x16x16xf32>
    %cst = arith.constant 0.000000e+00 : f32
    %6 = vector.broadcast %cst : f32 to vector<2x16x16xf32>
    %7 = arith.subf %6, %5 : vector<2x16x16xf32>
    %8 = math.exp %7 : vector<2x16x16xf32>
    %cst_5 = arith.constant 1.000000e+00 : f32
    %9 = vector.broadcast %cst_5 : f32 to vector<2x16x16xf32>
    %10 = arith.subf %9, %8 : vector<2x16x16xf32>
    %c0_6 = arith.constant 0 : index
    %c0_7 = arith.constant 0 : index
    %c0_8 = arith.constant 0 : index
    %11 = vector.load %arg3[%c0_6, %c0_7, %c0_8] : memref<2x1x16xf32, #tpu.memory_space<vmem>>, vector<2x1x16xf32>
    %c0_9 = arith.constant 0 : index
    %c0_10 = arith.constant 0 : index
    %c0_11 = arith.constant 0 : index
    %12 = vector.load %arg5[%c0_9, %c0_10, %c0_11] : memref<2x16x1xf32, #tpu.memory_space<vmem>>, vector<2x16x1xf32>
    %13 = vector.broadcast %11 : vector<2x1x16xf32> to vector<2x16x16xf32>
    %14 = vector.broadcast %12 : vector<2x16x1xf32> to vector<2x16x16xf32>
    %15 = arith.mulf %13, %14 : vector<2x16x16xf32>
    %c0_12 = arith.constant 0 : index
    %c0_13 = arith.constant 0 : index
    %c0_14 = arith.constant 0 : index
    %16 = vector.load %arg6[%c0_12, %c0_13, %c0_14] : memref<2x16x16xf32, #tpu.memory_space<vmem>>, vector<2x16x16xf32>
    %cst_15 = arith.constant 0.000000e+00 : f32
    %17 = vector.broadcast %cst_15 : f32 to vector<2x16x16xf32>
    %18 = arith.cmpf ogt, %15, %17 : vector<2x16x16xf32>
    %19 = arith.mulf %10, %16 : vector<2x16x16xf32>
    %cst_16 = arith.constant 0.000000e+00 : f32
    %20 = vector.broadcast %cst_16 : f32 to vector<2x16x16xf32>
    %21 = arith.select %18, %19, %20 : vector<2x16x16xi1>, vector<2x16x16xf32>
    %22 = vector.shape_cast %21 : vector<2x16x16xf32> to vector<1x2x16x16xf32>
    %cst_17 = arith.constant dense<0.000000e+00> : vector<1xf32>
    %23 = vector.multi_reduction <add>, %22, %cst_17 [1, 2, 3] : vector<1x2x16x16xf32> to vector<1xf32>
    %24 = vector.shape_cast %23 : vector<1xf32> to vector<1x1x1x1xf32>
    %25 = vector.extract %24[0, 0, 0, 0] : f32 from vector<1x1x1x1xf32>
    %c0_18 = arith.constant 0 : index
    %c0_19 = arith.constant 0 : index
    %26 = memref.load %arg7[%c0_18, %c0_19] : memref<1x1xf32, #tpu.memory_space<smem>>
    memref.store %25, %arg7[%c0_18, %c0_19] : memref<1x1xf32, #tpu.memory_space<smem>>
    return
  }
  func.func @transform_0(%arg0: i32, %arg1: i32) -> (i32, i32, i32) {
    %c0_i32 = arith.constant 0 : i32
    %c0_i32_0 = arith.constant 0 : i32
    %c0_i32_1 = arith.constant 0 : i32
    return %arg0, %c0_i32, %c0_i32_0 : i32, i32, i32
  }
  func.func @transform_1(%arg0: i32, %arg1: i32) -> (i32, i32, i32) {
    %c0_i32 = arith.constant 0 : i32
    %c0_i32_0 = arith.constant 0 : i32
    %c0_i32_1 = arith.constant 0 : i32
    return %arg0, %c0_i32, %c0_i32_0 : i32, i32, i32
  }
  func.func @transform_2(%arg0: i32, %arg1: i32) -> (i32, i32, i32) {
    %c0_i32 = arith.constant 0 : i32
    %c0_i32_0 = arith.constant 0 : i32
    return %arg0, %arg1, %c0_i32 : i32, i32, i32
  }
  func.func @transform_3(%arg0: i32, %arg1: i32) -> (i32, i32, i32) {
    %c0_i32 = arith.constant 0 : i32
    %c0_i32_0 = arith.constant 0 : i32
    return %arg0, %arg1, %c0_i32 : i32, i32, i32
  }
  func.func @transform_4(%arg0: i32, %arg1: i32) -> (i32, i32, i32) {
    %c0_i32 = arith.constant 0 : i32
    %c0_i32_0 = arith.constant 0 : i32
    return %arg0, %arg1, %c0_i32 : i32, i32, i32
  }
  func.func @transform_5(%arg0: i32, %arg1: i32) -> (i32, i32) {
    %c0_i32 = arith.constant 0 : i32
    return %arg0, %arg1 : i32, i32
  }
}

</mosaic_0001>

<llo_original>
// kernel: tpu_custom_call.1
$region0: #{tpu_custom_call.1}
  #allocation0 [shape = 'u32[]', space=smem, size = 0x4, offset = 0x4, fixed_abs, tag = 'smem constant byte address 0x4 - core index']
  #allocation1 [shape = 'u32[144,128]{1,0:T(1,128)}', space=vmem, size = 0x12000, scoped, tag = 'internal scratch']
  %s0 = inlined_call_operand.vmem [shape: f32[2,1,16], index: 0, kind: input, shape index: {}]
  %s1 = inlined_call_operand.vmem [shape: f32[2,1,16], index: 1, kind: input, shape index: {}]
  %s2 = inlined_call_operand.vmem [shape: f32[2,16,1], index: 2, kind: input, shape index: {}]
  %s3 = inlined_call_operand.vmem [shape: f32[2,16,1], index: 3, kind: input, shape index: {}]
  %s4 = inlined_call_operand.vmem [shape: f32[2,16,16], index: 4, kind: input, shape index: {}]
  %s5 = inlined_call_operand.hbm [shape: f32[1,1], index: 5, kind: output, shape index: {}]
  %s6 = sld [smem:[#allocation0]]
  $region30: #{tpu_custom_call.1} parent=0
    _
  %s8 = ssub.s32 1, %s6
  %s9 = scalar_select 0, %s8, %s6
  $region1: #{tpu_custom_call.1} parent=0
    #allocation2 [shape = 'u8[512]{0}', space=smem, size = 0x200, scoped, tag = 'output window, operand 0, single buffered']
    #allocation3 [shape = 's32[1]{0}', space=sflag, size = 0x4, scoped, tag = 'scoped memory for tpu_custom_call.1']
    %10 = vsyncpa [#allocation3], 0
    // Predicated region
    $region2: #{tpu_custom_call.1} parent=1 // pred_check
      _
    $region3: #{tpu_custom_call.1} parent=1 // pred_check_branch
      %12 = sbr.rel (0) target = $region5
    $region4: #{tpu_custom_call.1} parent=1 // pred_region
      _
    $region5: #{tpu_custom_call.1} parent=1 // pred_fallthru
      _
    // Predicated region
    $region6: #{tpu_custom_call.1} parent=1 // pred_check
      _
    $region7: #{tpu_custom_call.1} parent=1 // pred_check_branch
      %14 = sbr.rel (0) target = $region9
    $region8: #{tpu_custom_call.1} parent=1 // pred_region
      _
    $region9: #{tpu_custom_call.1} parent=1 // pred_fallthru
      _
    // Predicated region
    $region10: #{tpu_custom_call.1} parent=1 // pred_check
      _
    $region11: #{tpu_custom_call.1} parent=1 // pred_check_branch
      %16 = sbr.rel (0) target = $region13
    $region12: #{tpu_custom_call.1} parent=1 // pred_region
      _
    $region13: #{tpu_custom_call.1} parent=1 // pred_fallthru
      _
    // Predicated region
    $region14: #{tpu_custom_call.1} parent=1 // pred_check
      _
    $region15: #{tpu_custom_call.1} parent=1 // pred_check_branch
      %18 = sbr.rel (0) target = $region17
    $region16: #{tpu_custom_call.1} parent=1 // pred_region
      _
    $region17: #{tpu_custom_call.1} parent=1 // pred_fallthru
      _
    // Predicated region
    $region18: #{tpu_custom_call.1} parent=1 // pred_check
      _
    $region19: #{tpu_custom_call.1} parent=1 // pred_check_branch
      %20 = sbr.rel (0) target = $region21
    $region20: #{tpu_custom_call.1} parent=1 // pred_region
      _
    $region21: #{tpu_custom_call.1} parent=1 // pred_fallthru
      _
    %v21 = vld [vmem:[%s0] sm:$0x1]
    %v22 = vld [vmem:[%s0 + $0x1] sm:$0x1]
    %v23 = vld [vmem:[%s2] sm:$0xff]
    %v24 = vld [vmem:[%s2 + $0x8] sm:$0xff]
    %v25 = vld [vmem:[%s2 + $0x10] sm:$0xff]
    %v26 = vld [vmem:[%s2 + $0x18] sm:$0xff]
    %v29 = vlaneseq
    %v30 = vshrl.u32 %v29, 7
    %v31 = vsub.s32 0, %v30
    %v32 = vrot.slane %v21, %v31
    %v33 = vlaneseq
    %v34 = vshrl.u32 %v33, 7
    %v35 = vsub.s32 0, %v34
    %v36 = vrot.slane %v22, %v35
    %40 = vset.pattern.permute.xlu0 0
    %41 = vperm.xlu0 %40, %v23
    %v42 = vpop.permute.xlu0 %41
    %45 = vset.pattern.permute.xlu0 0
    %46 = vperm.xlu0 %45, %v24
    %v47 = vpop.permute.xlu0 %46
    %50 = vset.pattern.permute.xlu0 0
    %51 = vperm.xlu0 %50, %v25
    %v52 = vpop.permute.xlu0 %51
    %55 = vset.pattern.permute.xlu0 0
    %56 = vperm.xlu0 %55, %v26
    %v57 = vpop.permute.xlu0 %56
    %v59 = vsub.f32 %v32, %v42
    %v60 = vsub.f32 %v32, %v47
    %v61 = vsub.f32 %v36, %v52
    %v62 = vsub.f32 %v36, %v57
    %v63 = vmul.f32 %v59, %v59
    %v64 = vmul.f32 %v60, %v60
    %v65 = vmul.f32 %v61, %v61
    %v66 = vmul.f32 %v62, %v62
    %v67 = vsub.f32 0.0, %v63
    %v68 = vsub.f32 0.0, %v64
    %v69 = vsub.f32 0.0, %v65
    %v70 = vsub.f32 0.0, %v66
    %v71 = vmul.f32 %v67, 1.442695
    %v72 = vpow.pop %v71
    %v73 = vmul.f32 %v68, 1.442695
    %v74 = vpow.pop %v73
    %v75 = vmul.f32 %v69, 1.442695
    %v76 = vpow.pop %v75
    %v77 = vmul.f32 %v70, 1.442695
    %v78 = vpow.pop %v77
    %v79 = vsub.f32 1.0, %v72
    %v80 = vsub.f32 1.0, %v74
    %v81 = vsub.f32 1.0, %v76
    %v82 = vsub.f32 1.0, %v78
    %v83 = vld [vmem:[%s1] sm:$0x1]
    %v84 = vld [vmem:[%s1 + $0x1] sm:$0x1]
    %v85 = vld [vmem:[%s3] sm:$0xff]
    %v86 = vld [vmem:[%s3 + $0x8] sm:$0xff]
    %v87 = vld [vmem:[%s3 + $0x10] sm:$0xff]
    %v88 = vld [vmem:[%s3 + $0x18] sm:$0xff]
    %v91 = vlaneseq
    %v92 = vshrl.u32 %v91, 7
    %v93 = vsub.s32 0, %v92
    %v94 = vrot.slane %v83, %v93
    %v95 = vlaneseq
    %v96 = vshrl.u32 %v95, 7
    %v97 = vsub.s32 0, %v96
    %v98 = vrot.slane %v84, %v97
    %102 = vset.pattern.permute.xlu0 0
    %103 = vperm.xlu0 %102, %v85
    %v104 = vpop.permute.xlu0 %103
    %107 = vset.pattern.permute.xlu0 0
    %108 = vperm.xlu0 %107, %v86
    %v109 = vpop.permute.xlu0 %108
    %112 = vset.pattern.permute.xlu0 0
    %113 = vperm.xlu0 %112, %v87
    %v114 = vpop.permute.xlu0 %113
    %117 = vset.pattern.permute.xlu0 0
    %118 = vperm.xlu0 %117, %v88
    %v119 = vpop.permute.xlu0 %118
    %v121 = vmul.f32 %v94, %v104
    %v122 = vmul.f32 %v94, %v109
    %v123 = vmul.f32 %v98, %v114
    %v124 = vmul.f32 %v98, %v119
    %v125 = vld [vmem:[%s4] sm:$0xff]
    %v126 = vld [vmem:[%s4 + $0x8] sm:$0xff]
    %v127 = vld [vmem:[%s4 + $0x10] sm:$0xff]
    %v128 = vld [vmem:[%s4 + $0x18] sm:$0xff]
    %vm129 = vcmp.gt.f32.partialorder %v121, 0.0
    %vm130 = vcmp.gt.f32.partialorder %v122, 0.0
    %vm131 = vcmp.gt.f32.partialorder %v123, 0.0
    %vm132 = vcmp.gt.f32.partialorder %v124, 0.0
    %v133 = vmul.f32 %v79, %v125
    %v134 = vmul.f32 %v80, %v126
    %v135 = vmul.f32 %v81, %v127
    %v136 = vmul.f32 %v82, %v128
    %v137 = vsel %vm129, %v133, 0.0
    %v138 = vsel %vm130, %v134, 0.0
    %v139 = vsel %vm131, %v135, 0.0
    %v140 = vsel %vm132, %v136, 0.0
    %vm141 = vcmask 130048
    %v142 = vsel %vm141, %v137, 0.0
    %v143 = vsel %vm141, %v138, 0.0
    %v144 = vadd.f32 %v142, %v143
    %v145 = vsel %vm141, %v139, 0.0
    %v146 = vadd.f32 %v144, %v145
    %v147 = vsel %vm141, %v140, 0.0
    %v148 = vadd.f32 %v146, %v147
    %149 = vadd.xlane.f32.xlu0 %v148
    %v150 = vpop.xlane.xlu0 %149
    %v151 = vrot.slane %v150, 4
    %v152 = vadd.f32 %v150, %v151
    %v153 = vrot.slane %v152, 2
    %v154 = vadd.f32 %v152, %v153
    %v155 = vrot.slane %v154, 1
    %v156 = vadd.f32 %v154, %v155
    %s157 = vtos %v156
    %s158 = scalar_lea.smem [#allocation2], 0
    %159 = sst [smem:[%s158]] %s157
    // Predicated region
    $region22: #{tpu_custom_call.1} parent=1 // pred_check
      _
    $region23: #{tpu_custom_call.1} parent=1 // pred_check_branch
      %161 = sbr.rel (0) target = $region25
    $region24: #{tpu_custom_call.1} parent=1 // pred_region
      %s163 = ssub.s32 16, 16
      %164 = vsyncadd [#allocation3], %s163
      %167 = dma.smem_to_hbm [#allocation2], 16, %s5, [#allocation3]
    $region25: #{tpu_custom_call.1} parent=1 // pred_fallthru
      _
    // Predicated region
    $region26: #{tpu_custom_call.1} parent=1 // pred_check
      _
    $region27: #{tpu_custom_call.1} parent=1 // pred_check_branch
      %169 = sbr.rel (0) target = $region29
    $region28: #{tpu_custom_call.1} parent=1 // pred_region
      %170 = dma.done [#allocation3], 16
    $region29: #{tpu_custom_call.1} parent=1 // pred_fallthru
      _
    %171 = sfence
    %172 = vsyncpa [#allocation3], 1

</llo_original>
